<compile_context>
chip_gen: v6e
topology: v6e:2x2x1
jax: 0.10.0
libtpu: 0.0.40
codegen_flags: <defaults>
</compile_context>

<pallas_src>
import functools

import jax
import jax.numpy as jnp
from jax.experimental import pallas as pl
from jax.experimental.pallas import tpu as pltpu


def _round_up(x, m):
    return ((x + m - 1) // m) * m


def _default_compute_dtype():
    """bf16 elementwise (bias + GELU) only where the VPU/EUP support bf16."""
    try:
        kind = jax.devices()[0].device_kind.lower()
    except Exception:
        return jnp.float32
    if any(tag in kind for tag in ("v6", "v7", "tpu7")):
        return jnp.bfloat16
    return jnp.float32  # v5e / v4 / unknown: keep elementwise math in f32


def _choose_row_packing(M, C, max_lanes=128):
    """Largest r with r*C <= 128 lanes and r | M (rows folded into lanes)."""
    r_max = max(1, max_lanes // C)
    for r in range(min(r_max, M), 0, -1):
        if M % r == 0:
            return r
    return 1


def _choose_tm(m_packed, *, tm_max=1024, tm_min=256, min_grid=8):
    """Big row tile (amortize ~0.35us/grid-step), but keep >= min_grid steps
    when the problem allows so the parallel axis feeds both v7x TCs."""
    tm = min(tm_max, _round_up(m_packed, 8))
    while pl.cdiv(m_packed, tm) < min_grid and tm > tm_min:
        tm = max(tm_min, _round_up(tm // 2, 8))
    return tm


def _mlp_kernel(x_ref, avg_ref, w1_ref, b1_ref, w2_ref, b2_ref, o_ref, *, eps):
    # x_ref: (TM, Cp) tile; Cp = r*C packed rows along the lane dimension.
    x = x_ref[...].astype(jnp.float32)

    # ---- Segmented LayerNorm over each original C-wide row ------------------
    # avg = block_diag(ones(C,C)/C): one matmul on the otherwise-idle MXU
    # broadcasts each segment's mean (then variance) over its own C lanes.
    avg = avg_ref[...]
    mu = jnp.dot(x, avg, preferred_element_type=jnp.float32)
    xc = x - mu
    var = jnp.dot(xc * xc, avg, preferred_element_type=jnp.float32)
    xn = xc * jax.lax.rsqrt(var + eps)
    # gamma / beta are folded into W1 / b1 in the wrapper (mathematically exact).

    # ---- Linear1: (TM, Cp) @ (Cp, Hp), bf16 MXU, f32 accumulation -----------
    h = jnp.dot(xn.astype(w1_ref.dtype), w1_ref[...],
                preferred_element_type=jnp.float32)

    # ---- bias + exact-erf GELU in the elementwise compute dtype -------------
    # (bf16 on v6e/v7x -> 2 elems/lane on the largest elementwise tensor)
    h = h.astype(b1_ref.dtype) + b1_ref[...]
    h = 0.5 * h * (1.0 + jax.lax.erf(h * 0.7071067811865476))

    # ---- Linear2: (TM, Hp) @ (Hp, Cp) ----------------------------------------
    y = jnp.dot(h.astype(w2_ref.dtype), w2_ref[...],
                preferred_element_type=jnp.float32)
    y = y + b2_ref[...]
    o_ref[...] = y.astype(o_ref.dtype)


def prepare_mlp_params(gamma, beta, w1, b1, w2, b2, *, r=1,
                       weight_dtype=jnp.bfloat16, compute_dtype=None):
    """One-time parameter preparation (hoisted out of the forward call).

    * folds the LayerNorm affine into Linear1 (exact, in f32)
    * builds block-diagonal weights / averaging matrix for r-row lane packing
    * single downcast of the big matrices to bf16 (MXU native)

    w1: (C, 4C), w2: (4C, C) -- nn.Linear weights passed pre-transposed.
    """
    if compute_dtype is None:
        compute_dtype = _default_compute_dtype()
    C, H = w1.shape
    gamma = gamma.reshape(C).astype(jnp.float32)
    beta = beta.reshape(C).astype(jnp.float32)
    w1f = w1.astype(jnp.float32)
    w2f = w2.astype(jnp.float32)
    # (xn * gamma + beta) @ W1 + b1 == xn @ (gamma[:,None] * W1) + (beta @ W1 + b1)
    w1_fold = gamma[:, None] * w1f
    b1_fold = beta @ w1f + b1.astype(jnp.float32)
    eye = jnp.eye(r, dtype=jnp.float32)
    return dict(
        avg=jnp.kron(eye, jnp.full((C, C), 1.0 / C, jnp.float32)),      # (rC, rC) f32
        w1=jnp.kron(eye, w1_fold).astype(weight_dtype),                 # (rC, rH) bf16
        b1=jnp.tile(b1_fold, r).reshape(1, r * H).astype(compute_dtype),
        w2=jnp.kron(eye, w2f).astype(weight_dtype),                     # (rH, rC) bf16
        b2=jnp.tile(b2.astype(jnp.float32), r).reshape(1, r * C),
        r=r, C=C, H=H,
    )


def mlp_pallas(x, params, *, eps=1e-6, tm_max=1024):
    """x: (..., C) channels_last.  params from prepare_mlp_params; the packing
    factor r must divide the total row count of x (chosen that way below)."""
    r, C, H = params["r"], params["C"], params["H"]
    orig_shape = x.shape
    assert orig_shape[-1] == C
    M = int(x.size) // C
    assert M % r == 0, "row count must be divisible by the packing factor r"
    Mp, Cp, Hp = M // r, r * C, r * H
    xp = x.reshape(Mp, Cp)

    tm = _choose_tm(Mp, tm_max=tm_max)
    grid = (pl.cdiv(Mp, tm),)

    avg, w1, b1, w2, b2 = (params[k] for k in ("avg", "w1", "b1", "w2", "b2"))

    # VMEM budget derived from actual tile sizes: double-buffered x/out tiles
    # + (double-buffered) params + live f32/low-precision intermediates.
    itemsize = jnp.dtype(x.dtype).itemsize
    ew = jnp.dtype(b1.dtype).itemsize
    param_bytes = sum(int(p.size) * jnp.dtype(p.dtype).itemsize
                      for p in (avg, w1, b1, w2, b2))
    interm = tm * Cp * 4 * 4 + tm * Hp * (4 + 2 * ew)
    need = 4 * tm * Cp * itemsize + 2 * param_bytes + interm + (2 << 20)
    vmem_limit = int(min(max((need * 3) // 2, 32 << 20), 48 << 20))

    cost = pl.CostEstimate(
        flops=4 * Mp * Cp * Hp + 4 * Mp * Cp * Cp,   # 2 big matmuls + 2 LN matmuls
        transcendentals=Mp * Hp,                     # erf over the hidden tensor
        bytes_accessed=2 * Mp * Cp * itemsize + param_bytes,
    )

    out = pl.pallas_call(
        functools.partial(_mlp_kernel, eps=eps),
        out_shape=jax.ShapeDtypeStruct((Mp, Cp), x.dtype),
        grid_spec=pltpu.PrefetchScalarGridSpec(
            num_scalar_prefetch=0,
            grid=grid,
            in_specs=[
                pl.BlockSpec((tm, Cp), lambda i: (i, 0)),   # packed x rows
                pl.BlockSpec((Cp, Cp), lambda i: (0, 0)),   # LN averaging matrix (f32)
                pl.BlockSpec((Cp, Hp), lambda i: (0, 0)),   # W1 block-diag (bf16)
                pl.BlockSpec((1, Hp), lambda i: (0, 0)),    # b1 (compute dtype)
                pl.BlockSpec((Hp, Cp), lambda i: (0, 0)),   # W2 block-diag (bf16)
                pl.BlockSpec((1, Cp), lambda i: (0, 0)),    # b2 (f32)
            ],
            out_specs=pl.BlockSpec((tm, Cp), lambda i: (i, 0)),
        ),
        compiler_params=pltpu.CompilerParams(
            dimension_semantics=("parallel",),   # row tiles shard across TCs
            vmem_limit_bytes=vmem_limit,
        ),
        cost_estimate=cost,
    )(xp, avg, w1, b1, w2, b2)

    return out.reshape(orig_shape)


def mlp_reference(x, gamma, beta, w1, b1, w2, b2, eps=1e-6):
    xf = x.astype(jnp.float32)
    mu = jnp.mean(xf, axis=-1, keepdims=True)
    var = jnp.mean((xf - mu) ** 2, axis=-1, keepdims=True)
    xn = (xf - mu) / jnp.sqrt(var + eps) * gamma + beta
    h = xn @ w1 + b1
    h = 0.5 * h * (1.0 + jax.lax.erf(h / jnp.sqrt(2.0)))
    return (h @ w2 + b2).astype(x.dtype)


if __name__ == "__main__":
    def run_case(key, B, Hs, Ws, C, tm_max=1024):
        H = 4 * C
        ks = jax.random.split(key, 7)
        x = jax.random.normal(ks[0], (B, Hs, Ws, C), dtype=jnp.float32)
        # Non-trivial affine so the gamma/beta -> W1/b1 fold is actually tested.
        gamma = 1.0 + 0.1 * jax.random.normal(ks[1], (C,), jnp.float32)
        beta = 0.1 * jax.random.normal(ks[2], (C,), jnp.float32)
        # nn.Linear(dim, 4*dim): weight (4C, C) -> passed transposed as (C, 4C)
        w1 = jax.random.uniform(ks[3], (C, H), jnp.float32, -1.0, 1.0) / jnp.sqrt(C)
        b1 = jax.random.uniform(ks[4], (H,), jnp.float32, -1.0, 1.0) / jnp.sqrt(C)
        # nn.Linear(4*dim, dim): weight (C, 4C) -> passed transposed as (4C, C)
        w2 = jax.random.uniform(ks[5], (H, C), jnp.float32, -1.0, 1.0) / jnp.sqrt(H)
        b2 = jax.random.uniform(ks[6], (C,), jnp.float32, -1.0, 1.0) / jnp.sqrt(H)

        M = B * Hs * Ws
        r = _choose_row_packing(M, C)
        params = prepare_mlp_params(gamma, beta, w1, b1, w2, b2, r=r)

        y = jax.block_until_ready(mlp_pallas(x, params, tm_max=tm_max))
        y_ref = mlp_reference(x, gamma, beta, w1, b1, w2, b2)
        assert y.shape == x.shape
        # bf16 weights (+ bf16 GELU on v6e/v7x) with f32 accumulation -> relaxed tol.
        assert jnp.allclose(y, y_ref, atol=2.5e-2, rtol=2.5e-2), \
            f"mismatch vs reference (C={C}, r={r})"

    root = jax.random.PRNGKey(0)
    k1, k2 = jax.random.split(root)
    # dim=32: r=4 -> fully lane-dense 128-wide packed rows, single row block.
    run_case(k1, B=2, Hs=4, Ws=4, C=32)
    # dim=24 (D2Net stage-0 dim): r=5 -> 120 lanes; tm_max=8 forces a multi-step
    # grid with a ragged last block (exercises masked write-back of garbage rows).
    run_case(k2, B=2, Hs=5, Ws=5, C=24, tm_max=8)

    print("KERNEL_OK")
</pallas_src>

<mosaic_0001>
module attributes {stable_mosaic.version = 11 : i64} {
  func.func @_mlp_kernel(%arg0: i32, %arg1: memref<8x128xf32, #tpu.memory_space<vmem>>, %arg2: memref<128x128xf32, #tpu.memory_space<vmem>>, %arg3: memref<128x512xbf16, #tpu.memory_space<vmem>>, %arg4: memref<1x512xf32, #tpu.memory_space<vmem>>, %arg5: memref<512x128xbf16, #tpu.memory_space<vmem>>, %arg6: memref<1x128xf32, #tpu.memory_space<vmem>>, %arg7: memref<8x128xf32, #tpu.memory_space<vmem>>) attributes {dimension_semantics = [#tpu.dimension_semantics<parallel>], iteration_bounds = array<i64: 1>, scalar_prefetch = 0 : i64, scratch_operands = 0 : i64, tpu.core_type = #tpu.core_type<tc>, window_params = [{transform_indices = @transform_0, window_bounds = array<i64: 8, 128>}, {pipeline_mode = #tpu.pipeline_mode<synchronous>, transform_indices = @transform_1, window_bounds = array<i64: 128, 128>}, {pipeline_mode = #tpu.pipeline_mode<synchronous>, transform_indices = @transform_2, window_bounds = array<i64: 128, 512>}, {pipeline_mode = #tpu.pipeline_mode<synchronous>, transform_indices = @transform_3, window_bounds = array<i64: 1, 512>}, {pipeline_mode = #tpu.pipeline_mode<synchronous>, transform_indices = @transform_4, window_bounds = array<i64: 512, 128>}, {pipeline_mode = #tpu.pipeline_mode<synchronous>, transform_indices = @transform_5, window_bounds = array<i64: 1, 128>}, {transform_indices = @transform_6, window_bounds = array<i64: 8, 128>}]} {
    %c0 = arith.constant 0 : index
    %c0_0 = arith.constant 0 : index
    %0 = vector.load %arg1[%c0, %c0_0] : memref<8x128xf32, #tpu.memory_space<vmem>>, vector<8x128xf32>
    %c0_1 = arith.constant 0 : index
    %c0_2 = arith.constant 0 : index
    %1 = vector.load %arg2[%c0_1, %c0_2] : memref<128x128xf32, #tpu.memory_space<vmem>>, vector<128x128xf32>
    %cst = arith.constant dense<0.000000e+00> : vector<8x128xf32>
    %2 = tpu.matmul %0, %1, %cst {dimension_numbers = #tpu.dot_dimension_numbers<[1], [0], [0], [1], [0, 0, 1, 1], [], []>} : vector<8x128xf32>, vector<128x128xf32>, vector<8x128xf32> -> vector<8x128xf32>
    %3 = arith.subf %0, %2 : vector<8x128xf32>
    %4 = arith.mulf %3, %3 : vector<8x128xf32>
    %cst_3 = arith.constant dense<0.000000e+00> : vector<8x128xf32>
    %5 = tpu.matmul %4, %1, %cst_3 {dimension_numbers = #tpu.dot_dimension_numbers<[1], [0], [0], [1], [0, 0, 1, 1], [], []>} : vector<8x128xf32>, vector<128x128xf32>, vector<8x128xf32> -> vector<8x128xf32>
    %cst_4 = arith.constant 9.99999997E-7 : f32
    %6 = vector.broadcast %cst_4 : f32 to vector<8x128xf32>
    %7 = arith.addf %5, %6 : vector<8x128xf32>
    %8 = math.rsqrt %7 : vector<8x128xf32>
    %9 = arith.mulf %3, %8 : vector<8x128xf32>
    %10 = arith.truncf %9 : vector<8x128xf32> to vector<8x128xbf16>
    %c0_5 = arith.constant 0 : index
    %c0_6 = arith.constant 0 : index
    %11 = vector.load %arg3[%c0_5, %c0_6] : memref<128x512xbf16, #tpu.memory_space<vmem>>, vector<128x512xbf16>
    %cst_7 = arith.constant dense<0.000000e+00> : vector<8x512xf32>
    %12 = tpu.matmul %10, %11, %cst_7 {dimension_numbers = #tpu.dot_dimension_numbers<[1], [0], [0], [1], [0, 0, 1, 1], [], []>} : vector<8x128xbf16>, vector<128x512xbf16>, vector<8x512xf32> -> vector<8x512xf32>
    %c0_8 = arith.constant 0 : index
    %c0_9 = arith.constant 0 : index
    %13 = vector.load %arg4[%c0_8, %c0_9] : memref<1x512xf32, #tpu.memory_space<vmem>>, vector<1x512xf32>
    %14 = vector.broadcast %13 : vector<1x512xf32> to vector<8x512xf32>
    %15 = arith.addf %12, %14 : vector<8x512xf32>
    %cst_10 = arith.constant 5.000000e-01 : f32
    %16 = vector.broadcast %cst_10 : f32 to vector<8x512xf32>
    %17 = arith.mulf %16, %15 : vector<8x512xf32>
    %cst_11 = arith.constant 0.707106769 : f32
    %18 = vector.broadcast %cst_11 : f32 to vector<8x512xf32>
    %19 = arith.mulf %15, %18 : vector<8x512xf32>
    %20 = math.erf %19 : vector<8x512xf32>
    %cst_12 = arith.constant 1.000000e+00 : f32
    %21 = vector.broadcast %cst_12 : f32 to vector<8x512xf32>
    %22 = arith.addf %21, %20 : vector<8x512xf32>
    %23 = arith.mulf %17, %22 : vector<8x512xf32>
    %24 = arith.truncf %23 : vector<8x512xf32> to vector<8x512xbf16>
    %c0_13 = arith.constant 0 : index
    %c0_14 = arith.constant 0 : index
    %25 = vector.load %arg5[%c0_13, %c0_14] : memref<512x128xbf16, #tpu.memory_space<vmem>>, vector<512x128xbf16>
    %cst_15 = arith.constant dense<0.000000e+00> : vector<8x128xf32>
    %26 = tpu.matmul %24, %25, %cst_15 {dimension_numbers = #tpu.dot_dimension_numbers<[1], [0], [0], [1], [0, 0, 1, 1], [], []>} : vector<8x512xbf16>, vector<512x128xbf16>, vector<8x128xf32> -> vector<8x128xf32>
    %c0_16 = arith.constant 0 : index
    %c0_17 = arith.constant 0 : index
    %27 = vector.load %arg6[%c0_16, %c0_17] : memref<1x128xf32, #tpu.memory_space<vmem>>, vector<1x128xf32>
    %28 = vector.broadcast %27 : vector<1x128xf32> to vector<8x128xf32>
    %29 = arith.addf %26, %28 : vector<8x128xf32>
    %c0_18 = arith.constant 0 : index
    %c0_19 = arith.constant 0 : index
    %30 = vector.load %arg7[%c0_18, %c0_19] : memref<8x128xf32, #tpu.memory_space<vmem>>, vector<8x128xf32>
    tpu.vector_store %arg7[%c0_18, %c0_19], %29 {strides = array<i32>} : memref<8x128xf32, #tpu.memory_space<vmem>>, vector<8x128xf32>,
    return
  }
  func.func @transform_0(%arg0: i32) -> (i32, i32) {
    %c0_i32 = arith.constant 0 : i32
    %c0_i32_0 = arith.constant 0 : i32
    return %arg0, %c0_i32 : i32, i32
  }
  func.func @transform_1(%arg0: i32) -> (i32, i32) {
    %c0_i32 = arith.constant 0 : i32
    %c0_i32_0 = arith.constant 0 : i32
    %c0_i32_1 = arith.constant 0 : i32
    return %c0_i32, %c0_i32_0 : i32, i32
  }
  func.func @transform_2(%arg0: i32) -> (i32, i32) {
    %c0_i32 = arith.constant 0 : i32
    %c0_i32_0 = arith.constant 0 : i32
    %c0_i32_1 = arith.constant 0 : i32
    return %c0_i32, %c0_i32_0 : i32, i32
  }
  func.func @transform_3(%arg0: i32) -> (i32, i32) {
    %c0_i32 = arith.constant 0 : i32
    %c0_i32_0 = arith.constant 0 : i32
    %c0_i32_1 = arith.constant 0 : i32
    return %c0_i32, %c0_i32_0 : i32, i32
  }
  func.func @transform_4(%arg0: i32) -> (i32, i32) {
    %c0_i32 = arith.constant 0 : i32
    %c0_i32_0 = arith.constant 0 : i32
    %c0_i32_1 = arith.constant 0 : i32
    return %c0_i32, %c0_i32_0 : i32, i32
  }
  func.func @transform_5(%arg0: i32) -> (i32, i32) {
    %c0_i32 = arith.constant 0 : i32
    %c0_i32_0 = arith.constant 0 : i32
    %c0_i32_1 = arith.constant 0 : i32
    return %c0_i32, %c0_i32_0 : i32, i32
  }
  func.func @transform_6(%arg0: i32) -> (i32, i32) {
    %c0_i32 = arith.constant 0 : i32
    %c0_i32_0 = arith.constant 0 : i32
    return %arg0, %c0_i32 : i32, i32
  }
}

</mosaic_0001>

<llo_original>
// kernel: tpu_custom_call.1
$region0: #{tpu_custom_call.1}
  #allocation0 [shape = 'u32[]', space=smem, size = 0x4, offset = 0x4, fixed_abs, tag = 'smem constant byte address 0x4 - core index']
  #allocation1 [shape = 'u32[144,128]{1,0:T(1,128)}', space=vmem, size = 0x12000, scoped, tag = 'internal scratch']
  %s0 = inlined_call_operand.hbm [shape: f32[8,128], index: 0, kind: input, shape index: {}]
  %s1 = inlined_call_operand.hbm [shape: f32[128,128], index: 1, kind: input, shape index: {}]
  %s2 = inlined_call_operand.hbm [shape: bf16[128,512], index: 2, kind: input, shape index: {}]
  %s3 = inlined_call_operand.vmem [shape: f32[1,512], index: 3, kind: input, shape index: {}]
  %s4 = inlined_call_operand.hbm [shape: bf16[512,128], index: 4, kind: input, shape index: {}]
  %s5 = inlined_call_operand.vmem [shape: f32[1,128], index: 5, kind: input, shape index: {}]
  %s6 = inlined_call_operand.hbm [shape: f32[8,128], index: 6, kind: output, shape index: {}]
  %s7 = sld [smem:[#allocation0]]
  $region50: #{tpu_custom_call.1} parent=0
    _
  %s9 = ssub.s32 1, %s7
  %s10 = scalar_select 0, %s9, %s7
  $region1: #{tpu_custom_call.1} parent=0
    #allocation2 [shape = 'u8[4096]{0}', space=vmem, size = 0x1000, scoped, tag = 'input window, operand 0, single buffered']
    #allocation3 [shape = 's32[1]{0}', space=sflag, size = 0x4, scoped, tag = 'scoped memory for tpu_custom_call.1']
    #allocation4 [shape = 's32[1]{0}', space=sflag, size = 0x4, scoped, tag = 'scoped memory for tpu_custom_call.1']
    #allocation5 [shape = 'u8[65536]{0}', space=vmem, size = 0x10000, scoped, tag = 'input window, operand 1, single buffered']
    #allocation6 [shape = 's32[1]{0}', space=sflag, size = 0x4, scoped, tag = 'scoped memory for tpu_custom_call.1']
    #allocation7 [shape = 'u8[131072]{0}', space=vmem, size = 0x20000, scoped, tag = 'input window, operand 2, single buffered']
    #allocation8 [shape = 'u8[131072]{0}', space=vmem, size = 0x20000, scoped, tag = 'input window, operand 4, single buffered']
    #allocation9 [shape = 's32[1]{0}', space=sflag, size = 0x4, scoped, tag = 'scoped memory for tpu_custom_call.1']
    #allocation10 [shape = 'u8[4096]{0}', space=vmem, size = 0x1000, scoped, tag = 'output window, operand 0, single buffered']
    %11 = vsyncpa [#allocation3], 0
    %12 = vsyncpa [#allocation6], 0
    %13 = vsyncpa [#allocation9], 0
    %14 = vsyncpa [#allocation4], 0
    // Predicated region
    $region2: #{tpu_custom_call.1} parent=1 // pred_check
      _
    $region3: #{tpu_custom_call.1} parent=1 // pred_check_branch
      %16 = sbr.rel (0) target = $region5
    $region4: #{tpu_custom_call.1} parent=1 // pred_region
      %s18 = ssub.s32 128, 128
      %19 = vsyncadd [#allocation3], %s18
      %s21 = sshll.u32 [#allocation2], 4
      %s22 = int_to_ptr.vmem [resolvable:$true] %s21
      %24 = dma.hbm_to_vmem [thread:$0]  %s0, 128, %s22, [#allocation3]
    $region5: #{tpu_custom_call.1} parent=1 // pred_fallthru
      _
    // Predicated region
    $region6: #{tpu_custom_call.1} parent=1 // pred_check
      _
    $region7: #{tpu_custom_call.1} parent=1 // pred_check_branch
      %26 = sbr.rel (0) target = $region9
    $region8: #{tpu_custom_call.1} parent=1 // pred_region
      %s28 = ssub.s32 2048, 2048
      %29 = vsyncadd [#allocation6], %s28
      %s30 = sshll.u32 [#allocation5], 4
      %s31 = int_to_ptr.vmem [resolvable:$true] %s30
      %36 = dma.hbm_to_vmem [thread:$0]  %s1, 2048, %s31, [#allocation6], 128, 128, 8
    $region9: #{tpu_custom_call.1} parent=1 // pred_fallthru
      _
    // Predicated region
    $region10: #{tpu_custom_call.1} parent=1 // pred_check
      _
    $region11: #{tpu_custom_call.1} parent=1 // pred_check_branch
      %38 = sbr.rel (0) target = $region13
    $region12: #{tpu_custom_call.1} parent=1 // pred_region
      %s40 = ssub.s32 4096, 4096
      %41 = vsyncadd [#allocation6], %s40
      %s42 = sshll.u32 [#allocation7], 4
      %s43 = int_to_ptr.vmem [resolvable:$true] %s42
      %48 = dma.hbm_to_vmem [thread:$0]  %s2, 4096, %s43, [#allocation6], 256, 256, 16
    $region13: #{tpu_custom_call.1} parent=1 // pred_fallthru
      _
    // Predicated region
    $region14: #{tpu_custom_call.1} parent=1 // pred_check
      _
    $region15: #{tpu_custom_call.1} parent=1 // pred_check_branch
      %50 = sbr.rel (0) target = $region17
    $region16: #{tpu_custom_call.1} parent=1 // pred_region
      _
    $region17: #{tpu_custom_call.1} parent=1 // pred_fallthru
      _
    // Predicated region
    $region18: #{tpu_custom_call.1} parent=1 // pred_check
      _
    $region19: #{tpu_custom_call.1} parent=1 // pred_check_branch
      %52 = sbr.rel (0) target = $region21
    $region20: #{tpu_custom_call.1} parent=1 // pred_region
      %s54 = ssub.s32 4096, 4096
      %55 = vsyncadd [#allocation9], %s54
      %s56 = sshll.u32 [#allocation8], 4
      %s57 = int_to_ptr.vmem [resolvable:$true] %s56
      %62 = dma.hbm_to_vmem [thread:$0]  %s4, 4096, %s57, [#allocation9], 64, 64, 4
    $region21: #{tpu_custom_call.1} parent=1 // pred_fallthru
      _
    // Predicated region
    $region22: #{tpu_custom_call.1} parent=1 // pred_check
      _
    $region23: #{tpu_custom_call.1} parent=1 // pred_check_branch
      %64 = sbr.rel (0) target = $region25
    $region24: #{tpu_custom_call.1} parent=1 // pred_region
      _
    $region25: #{tpu_custom_call.1} parent=1 // pred_fallthru
      _
    // Predicated region
    $region26: #{tpu_custom_call.1} parent=1 // pred_check
      _
    $region27: #{tpu_custom_call.1} parent=1 // pred_check_branch
      %66 = sbr.rel (0) target = $region29
    $region28: #{tpu_custom_call.1} parent=1 // pred_region
      %67 = dma.done [#allocation3], 128
    $region29: #{tpu_custom_call.1} parent=1 // pred_fallthru
      _
    // Predicated region
    $region30: #{tpu_custom_call.1} parent=1 // pred_check
      _
    $region31: #{tpu_custom_call.1} parent=1 // pred_check_branch
      %69 = sbr.rel (0) target = $region33
    $region32: #{tpu_custom_call.1} parent=1 // pred_region
      %70 = dma.done [#allocation6], 2048
    $region33: #{tpu_custom_call.1} parent=1 // pred_fallthru
      _
    // Predicated region
    $region34: #{tpu_custom_call.1} parent=1 // pred_check
      _
    $region35: #{tpu_custom_call.1} parent=1 // pred_check_branch
      %72 = sbr.rel (0) target = $region37
    $region36: #{tpu_custom_call.1} parent=1 // pred_region
      %73 = dma.done [#allocation6], 4096
    $region37: #{tpu_custom_call.1} parent=1 // pred_fallthru
      _
    // Predicated region
    $region38: #{tpu_custom_call.1} parent=1 // pred_check
      _
    $region39: #{tpu_custom_call.1} parent=1 // pred_check_branch
      %75 = sbr.rel (0) target = $region41
    $region40: #{tpu_custom_call.1} parent=1 // pred_region
      %76 = dma.done [#allocation9], 4096
    $region41: #{tpu_custom_call.1} parent=1 // pred_fallthru
      _
    %v78 = vld [vmem:[#allocation2] sm:$0xff]
    %v79 = vld [vmem:[#allocation5] sm:$0xff]
    %v80 = vld [vmem:[#allocation5 + $0x8] sm:$0xff]
    %v81 = vld [vmem:[#allocation5 + $0x10] sm:$0xff]
    %v82 = vld [vmem:[#allocation5 + $0x18] sm:$0xff]
    %v83 = vld [vmem:[#allocation5 + $0x20] sm:$0xff]
    %v84 = vld [vmem:[#allocation5 + $0x28] sm:$0xff]
    %v85 = vld [vmem:[#allocation5 + $0x30] sm:$0xff]
    %v86 = vld [vmem:[#allocation5 + $0x38] sm:$0xff]
    %v87 = vld [vmem:[#allocation5 + $0x40] sm:$0xff]
    %v88 = vld [vmem:[#allocation5 + $0x48] sm:$0xff]
    %v89 = vld [vmem:[#allocation5 + $0x50] sm:$0xff]
    %v90 = vld [vmem:[#allocation5 + $0x58] sm:$0xff]
    %v91 = vld [vmem:[#allocation5 + $0x60] sm:$0xff]
    %v92 = vld [vmem:[#allocation5 + $0x68] sm:$0xff]
    %v93 = vld [vmem:[#allocation5 + $0x70] sm:$0xff]
    %v94 = vld [vmem:[#allocation5 + $0x78] sm:$0xff]
    %95 = vmatprep.subr.mxu0 0.0
    %96 = vmatpush1.msra.mxu0 %v94
    %97 = vmatprep.subr.mxu0 0.0
    %98 = vmatpush1.msra.mxu0 %v93
    %99 = vmatprep.subr.mxu0 0.0
    %100 = vmatpush1.msra.mxu0 %v92
    %101 = vmatprep.subr.mxu0 0.0
    %102 = vmatpush1.msra.mxu0 %v91
    %103 = vmatprep.subr.mxu0 0.0
    %104 = vmatpush1.msra.mxu0 %v90
    %105 = vmatprep.subr.mxu0 0.0
    %106 = vmatpush1.msra.mxu0 %v89
    %107 = vmatprep.subr.mxu0 0.0
    %108 = vmatpush1.msra.mxu0 %v88
    %109 = vmatprep.subr.mxu0 0.0
    %110 = vmatpush1.msra.mxu0 %v87
    %111 = vmatprep.subr.mxu0 0.0
    %112 = vmatpush1.msra.mxu0 %v86
    %113 = vmatprep.subr.mxu0 0.0
    %114 = vmatpush1.msra.mxu0 %v85
    %115 = vmatprep.subr.mxu0 0.0
    %116 = vmatpush1.msra.mxu0 %v84
    %117 = vmatprep.subr.mxu0 0.0
    %118 = vmatpush1.msra.mxu0 %v83
    %119 = vmatprep.subr.mxu0 0.0
    %120 = vmatpush1.msra.mxu0 %v82
    %121 = vmatprep.subr.mxu0 0.0
    %122 = vmatpush1.msra.mxu0 %v81
    %123 = vmatprep.subr.mxu0 0.0
    %124 = vmatpush1.msra.mxu0 %v80
    %125 = vmatprep.subr.mxu0 0.0
    %126 = vmatpush1.msra.mxu0 %v79
    %127 = vmatprep.subr.mxu0 0.0
    %128 = vmatpush2.msra.mxu0 0.0
    %129 = vmatprep.subr.mxu0 0.0
    %130 = vmatpush2.msra.mxu0 0.0
    %131 = vmatprep.subr.mxu0 0.0
    %132 = vmatpush2.msra.mxu0 0.0
    %133 = vmatprep.subr.mxu0 0.0
    %134 = vmatpush2.msra.mxu0 0.0
    %135 = vmatprep.subr.mxu0 0.0
    %136 = vmatpush2.msra.mxu0 0.0
    %137 = vmatprep.subr.mxu0 0.0
    %138 = vmatpush2.msra.mxu0 0.0
    %139 = vmatprep.subr.mxu0 0.0
    %140 = vmatpush2.msra.mxu0 0.0
    %141 = vmatprep.subr.mxu0 0.0
    %142 = vmatpush2.msra.mxu0 0.0
    %143 = vmatprep.subr.mxu0 0.0
    %144 = vmatpush2.msra.mxu0 0.0
    %145 = vmatprep.subr.mxu0 0.0
    %146 = vmatpush2.msra.mxu0 0.0
    %147 = vmatprep.subr.mxu0 0.0
    %148 = vmatpush2.msra.mxu0 0.0
    %149 = vmatprep.subr.mxu0 0.0
    %150 = vmatpush2.msra.mxu0 0.0
    %151 = vmatprep.subr.mxu0 0.0
    %152 = vmatpush2.msra.mxu0 0.0
    %153 = vmatprep.subr.mxu0 0.0
    %154 = vmatpush2.msra.mxu0 0.0
    %155 = vmatprep.subr.mxu0 0.0
    %156 = vmatpush2.msra.mxu0 0.0
    %157 = vmatprep.subr.mxu0 0.0
    %158 = vmatpush2.msra.mxu0 0.0
    %159 = vmatprep.mubr.f32.mxu0 0.0
    %160 = vmatmul.mubr.f32.gmra.mxu0 %v78
    %v161 = vpop.f32.mrf.mxu0
    %v162 = vadd.f32 0.0, %v161
    %v163 = vpop.f32.mrf.mxu0
    %164 = vdwg.mxu0
    %v165 = vsub.f32 %v78, %v162
    %v166 = vmul.f32 %v165, %v165
    %167 = vmatprep.subr.mxu0 0.0
    %168 = vmatpush1.msra.mxu0 %v94
    %169 = vmatprep.subr.mxu0 0.0
    %170 = vmatpush1.msra.mxu0 %v93
    %171 = vmatprep.subr.mxu0 0.0
    %172 = vmatpush1.msra.mxu0 %v92
    %173 = vmatprep.subr.mxu0 0.0
    %174 = vmatpush1.msra.mxu0 %v91
    %175 = vmatprep.subr.mxu0 0.0
    %176 = vmatpush1.msra.mxu0 %v90
    %177 = vmatprep.subr.mxu0 0.0
    %178 = vmatpush1.msra.mxu0 %v89
    %179 = vmatprep.subr.mxu0 0.0
    %180 = vmatpush1.msra.mxu0 %v88
    %181 = vmatprep.subr.mxu0 0.0
    %182 = vmatpush1.msra.mxu0 %v87
    %183 = vmatprep.subr.mxu0 0.0
    %184 = vmatpush1.msra.mxu0 %v86
    %185 = vmatprep.subr.mxu0 0.0
    %186 = vmatpush1.msra.mxu0 %v85
    %187 = vmatprep.subr.mxu0 0.0
    %188 = vmatpush1.msra.mxu0 %v84
    %189 = vmatprep.subr.mxu0 0.0
    %190 = vmatpush1.msra.mxu0 %v83
    %191 = vmatprep.subr.mxu0 0.0
    %192 = vmatpush1.msra.mxu0 %v82
    %193 = vmatprep.subr.mxu0 0.0
    %194 = vmatpush1.msra.mxu0 %v81
    %195 = vmatprep.subr.mxu0 0.0
    %196 = vmatpush1.msra.mxu0 %v80
    %197 = vmatprep.subr.mxu0 0.0
    %198 = vmatpush1.msra.mxu0 %v79
    %199 = vmatprep.subr.mxu0 0.0
    %200 = vmatpush2.msra.mxu0 0.0
    %201 = vmatprep.subr.mxu0 0.0
    %202 = vmatpush2.msra.mxu0 0.0
    %203 = vmatprep.subr.mxu0 0.0
    %204 = vmatpush2.msra.mxu0 0.0
    %205 = vmatprep.subr.mxu0 0.0
    %206 = vmatpush2.msra.mxu0 0.0
    %207 = vmatprep.subr.mxu0 0.0
    %208 = vmatpush2.msra.mxu0 0.0
    %209 = vmatprep.subr.mxu0 0.0
    %210 = vmatpush2.msra.mxu0 0.0
    %211 = vmatprep.subr.mxu0 0.0
    %212 = vmatpush2.msra.mxu0 0.0
    %213 = vmatprep.subr.mxu0 0.0
    %214 = vmatpush2.msra.mxu0 0.0
    %215 = vmatprep.subr.mxu0 0.0
    %216 = vmatpush2.msra.mxu0 0.0
    %217 = vmatprep.subr.mxu0 0.0
    %218 = vmatpush2.msra.mxu0 0.0
    %219 = vmatprep.subr.mxu0 0.0
    %220 = vmatpush2.msra.mxu0 0.0
    %221 = vmatprep.subr.mxu0 0.0
    %222 = vmatpush2.msra.mxu0 0.0
    %223 = vmatprep.subr.mxu0 0.0
    %224 = vmatpush2.msra.mxu0 0.0
    %225 = vmatprep.subr.mxu0 0.0
    %226 = vmatpush2.msra.mxu0 0.0
    %227 = vmatprep.subr.mxu0 0.0
    %228 = vmatpush2.msra.mxu0 0.0
    %229 = vmatprep.subr.mxu0 0.0
    %230 = vmatpush2.msra.mxu0 0.0
    %231 = vmatprep.mubr.f32.mxu0 0.0
    %232 = vmatmul.mubr.f32.gmra.mxu0 %v166
    %v233 = vpop.f32.mrf.mxu0
    %v234 = vadd.f32 1e-06, %v233
    %v235 = vpop.f32.mrf.mxu0
    %236 = vdwg.mxu0
    %v237 = vrsqrt.pop %v234
    %v238 = vmul.f32 %v165, %v237
    %v239 = vpack.c.bf16 %v238, %v238
    %v240 = vld [vmem:[#allocation7] sm:$0xff]
    %v241 = vld [vmem:[#allocation7 + $0x8] sm:$0xff]
    %v242 = vld [vmem:[#allocation7 + $0x10] sm:$0xff]
    %v243 = vld [vmem:[#allocation7 + $0x18] sm:$0xff]
    %v244 = vld [vmem:[#allocation7 + $0x20] sm:$0xff]
    %v245 = vld [vmem:[#allocation7 + $0x28] sm:$0xff]
    %v246 = vld [vmem:[#allocation7 + $0x30] sm:$0xff]
    %v247 = vld [vmem:[#allocation7 + $0x38] sm:$0xff]
    %v248 = vld [vmem:[#allocation7 + $0x40] sm:$0xff]
    %v249 = vld [vmem:[#allocation7 + $0x48] sm:$0xff]
    %v250 = vld [vmem:[#allocation7 + $0x50] sm:$0xff]
    %v251 = vld [vmem:[#allocation7 + $0x58] sm:$0xff]
    %v252 = vld [vmem:[#allocation7 + $0x60] sm:$0xff]
    %v253 = vld [vmem:[#allocation7 + $0x68] sm:$0xff]
    %v254 = vld [vmem:[#allocation7 + $0x70] sm:$0xff]
    %v255 = vld [vmem:[#allocation7 + $0x78] sm:$0xff]
    %v256 = vld [vmem:[#allocation7 + $0x80] sm:$0xff]
    %v257 = vld [vmem:[#allocation7 + $0x88] sm:$0xff]
    %v258 = vld [vmem:[#allocation7 + $0x90] sm:$0xff]
    %v259 = vld [vmem:[#allocation7 + $0x98] sm:$0xff]
    %v260 = vld [vmem:[#allocation7 + $0xa0] sm:$0xff]
    %v261 = vld [vmem:[#allocation7 + $0xa8] sm:$0xff]
    %v262 = vld [vmem:[#allocation7 + $0xb0] sm:$0xff]
    %v263 = vld [vmem:[#allocation7 + $0xb8] sm:$0xff]
    %v264 = vld [vmem:[#allocation7 + $0xc0] sm:$0xff]
    %v265 = vld [vmem:[#allocation7 + $0xc8] sm:$0xff]
    %v266 = vld [vmem:[#allocation7 + $0xd0] sm:$0xff]
    %v267 = vld [vmem:[#allocation7 + $0xd8] sm:$0xff]
    %v268 = vld [vmem:[#allocation7 + $0xe0] sm:$0xff]
    %v269 = vld [vmem:[#allocation7 + $0xe8] sm:$0xff]
    %v270 = vld [vmem:[#allocation7 + $0xf0] sm:$0xff]
    %v271 = vld [vmem:[#allocation7 + $0xf8] sm:$0xff]
    %v272 = vld [vmem:[%s3] sm:$0xf]
    %v274 = vlaneseq
    %v275 = vshrl.u32 %v274, 7
    %v276 = vsub.s32 0, %v275
    %v277 = vrot.slane %v272, %v276
    %v278 = vlaneseq
    %v279 = vshrl.u32 %v278, 7
    %v280 = vsub.s32 1, %v279
    %v281 = vrot.slane %v272, %v280
    %v282 = vlaneseq
    %v283 = vshrl.u32 %v282, 7
    %v284 = vsub.s32 2, %v283
    %v285 = vrot.slane %v272, %v284
    %v286 = vlaneseq
    %v287 = vshrl.u32 %v286, 7
    %v288 = vsub.s32 3, %v287
    %v289 = vrot.slane %v272, %v288
    %v326 = vunpack.c.l.b16 %v240
    %v327 = vunpack.c.h.b16 %v240
    %v328 = vunpack.c.l.b16 %v241
    %v329 = vunpack.c.h.b16 %v241
    %v330 = vunpack.c.l.b16 %v242
    %v331 = vunpack.c.h.b16 %v242
    %v332 = vunpack.c.l.b16 %v243
    %v333 = vunpack.c.h.b16 %v243
    %v334 = vunpack.c.l.b16 %v244
    %v335 = vunpack.c.h.b16 %v244
    %v336 = vunpack.c.l.b16 %v245
    %v337 = vunpack.c.h.b16 %v245
    %v338 = vunpack.c.l.b16 %v246
    %v339 = vunpack.c.h.b16 %v246
    %v340 = vunpack.c.l.b16 %v247
    %v341 = vunpack.c.h.b16 %v247
    %v342 = vunpack.c.l.b16 %v248
    %v343 = vunpack.c.h.b16 %v248
    %v344 = vunpack.c.l.b16 %v249
    %v345 = vunpack.c.h.b16 %v249
    %v346 = vunpack.c.l.b16 %v250
    %v347 = vunpack.c.h.b16 %v250
    %v348 = vunpack.c.l.b16 %v251
    %v349 = vunpack.c.h.b16 %v251
    %v350 = vunpack.c.l.b16 %v252
    %v351 = vunpack.c.h.b16 %v252
    %v352 = vunpack.c.l.b16 %v253
    %v353 = vunpack.c.h.b16 %v253
    %v354 = vunpack.c.l.b16 %v254
    %v355 = vunpack.c.h.b16 %v254
    %v356 = vunpack.c.l.b16 %v255
    %v357 = vunpack.c.h.b16 %v255
    %v358 = vunpack.c.l.b16 %v256
    %v359 = vunpack.c.h.b16 %v256
    %v360 = vunpack.c.l.b16 %v257
    %v361 = vunpack.c.h.b16 %v257
    %v362 = vunpack.c.l.b16 %v258
    %v363 = vunpack.c.h.b16 %v258
    %v364 = vunpack.c.l.b16 %v259
    %v365 = vunpack.c.h.b16 %v259
    %v366 = vunpack.c.l.b16 %v260
    %v367 = vunpack.c.h.b16 %v260
    %v368 = vunpack.c.l.b16 %v261
    %v369 = vunpack.c.h.b16 %v261
    %v370 = vunpack.c.l.b16 %v262
    %v371 = vunpack.c.h.b16 %v262
    %v372 = vunpack.c.l.b16 %v263
    %v373 = vunpack.c.h.b16 %v263
    %v374 = vunpack.c.l.b16 %v264
    %v375 = vunpack.c.h.b16 %v264
    %v376 = vunpack.c.l.b16 %v265
    %v377 = vunpack.c.h.b16 %v265
    %v378 = vunpack.c.l.b16 %v266
    %v379 = vunpack.c.h.b16 %v266
    %v380 = vunpack.c.l.b16 %v267
    %v381 = vunpack.c.h.b16 %v267
    %v382 = vunpack.c.l.b16 %v268
    %v383 = vunpack.c.h.b16 %v268
    %v384 = vunpack.c.l.b16 %v269
    %v385 = vunpack.c.h.b16 %v269
    %v386 = vunpack.c.l.b16 %v270
    %v387 = vunpack.c.h.b16 %v270
    %v388 = vunpack.c.l.b16 %v271
    %v389 = vunpack.c.h.b16 %v271
    %v390 = vpack.c.b16 %v330, %v326
    %v391 = vpack.c.b16 %v331, %v327
    %v392 = vpack.c.b16 %v332, %v328
    %v393 = vpack.c.b16 %v333, %v329
    %v394 = vpack.c.b16 %v338, %v334
    %v395 = vpack.c.b16 %v339, %v335
    %v396 = vpack.c.b16 %v340, %v336
    %v397 = vpack.c.b16 %v341, %v337
    %v398 = vpack.c.b16 %v346, %v342
    %v399 = vpack.c.b16 %v347, %v343
    %v400 = vpack.c.b16 %v348, %v344
    %v401 = vpack.c.b16 %v349, %v345
    %v402 = vpack.c.b16 %v354, %v350
    %v403 = vpack.c.b16 %v355, %v351
    %v404 = vpack.c.b16 %v356, %v352
    %v405 = vpack.c.b16 %v357, %v353
    %v406 = vpack.c.b16 %v362, %v358
    %v407 = vpack.c.b16 %v363, %v359
    %v408 = vpack.c.b16 %v364, %v360
    %v409 = vpack.c.b16 %v365, %v361
    %v410 = vpack.c.b16 %v370, %v366
    %v411 = vpack.c.b16 %v371, %v367
    %v412 = vpack.c.b16 %v372, %v368
    %v413 = vpack.c.b16 %v373, %v369
    %v414 = vpack.c.b16 %v378, %v374
    %v415 = vpack.c.b16 %v379, %v375
    %v416 = vpack.c.b16 %v380, %v376
    %v417 = vpack.c.b16 %v381, %v377
    %v418 = vpack.c.b16 %v386, %v382
    %v419 = vpack.c.b16 %v387, %v383
    %v420 = vpack.c.b16 %v388, %v384
    %v421 = vpack.c.b16 %v389, %v385
    %454 = vmatprep.subr.bf16.mxu0 %v419
    %455 = vmatpush1.bf16.msra.mxu0 %v418
    %456 = vmatprep.subr.bf16.mxu0 %v415
    %457 = vmatpush1.bf16.msra.mxu0 %v414
    %458 = vmatprep.subr.bf16.mxu0 %v411
    %459 = vmatpush1.bf16.msra.mxu0 %v410
    %460 = vmatprep.subr.bf16.mxu0 %v407
    %461 = vmatpush1.bf16.msra.mxu0 %v406
    %462 = vmatprep.subr.bf16.mxu0 %v403
    %463 = vmatpush1.bf16.msra.mxu0 %v402
    %464 = vmatprep.subr.bf16.mxu0 %v399
    %465 = vmatpush1.bf16.msra.mxu0 %v398
    %466 = vmatprep.subr.bf16.mxu0 %v395
    %467 = vmatpush1.bf16.msra.mxu0 %v394
    %468 = vmatprep.subr.bf16.mxu0 %v391
    %469 = vmatpush1.bf16.msra.mxu0 %v390
    %470 = vmatprep.subr.bf16.mxu0 0
    %471 = vmatpush2.bf16.msra.mxu0 0
    %472 = vmatprep.subr.bf16.mxu0 0
    %473 = vmatpush2.bf16.msra.mxu0 0
    %474 = vmatprep.subr.bf16.mxu0 0
    %475 = vmatpush2.bf16.msra.mxu0 0
    %476 = vmatprep.subr.bf16.mxu0 0
    %477 = vmatpush2.bf16.msra.mxu0 0
    %478 = vmatprep.subr.bf16.mxu0 0
    %479 = vmatpush2.bf16.msra.mxu0 0
    %480 = vmatprep.subr.bf16.mxu0 0
    %481 = vmatpush2.bf16.msra.mxu0 0
    %482 = vmatprep.subr.bf16.mxu0 0
    %483 = vmatpush2.bf16.msra.mxu0 0
    %484 = vmatprep.subr.bf16.mxu0 0
    %485 = vmatpush2.bf16.msra.mxu0 0
    %486 = vmatprep.mubr.bf16.mxu0 0
    %487 = vmatmul.mubr.bf16.gmra.mxu0 %v239
    %v488 = vpop.f32.mrf.mxu0
    %v489 = vadd.f32 %v277, %v488
    %v490 = vpop.f32.mrf.mxu0
    %v491 = vadd.f32 %v281, %v490
    %v492 = vpop.f32.mrf.mxu0
    %v493 = vpop.f32.mrf.mxu0
    %494 = vdwg.mxu0
    %495 = vmatprep.subr.bf16.mxu0 %v421
    %496 = vmatpush1.bf16.msra.mxu0 %v420
    %497 = vmatprep.subr.bf16.mxu0 %v417
    %498 = vmatpush1.bf16.msra.mxu0 %v416
    %499 = vmatprep.subr.bf16.mxu0 %v413
    %500 = vmatpush1.bf16.msra.mxu0 %v412
    %501 = vmatprep.subr.bf16.mxu0 %v409
    %502 = vmatpush1.bf16.msra.mxu0 %v408
    %503 = vmatprep.subr.bf16.mxu0 %v405
    %504 = vmatpush1.bf16.msra.mxu0 %v404
    %505 = vmatprep.subr.bf16.mxu0 %v401
    %506 = vmatpush1.bf16.msra.mxu0 %v400
    %507 = vmatprep.subr.bf16.mxu0 %v397
    %508 = vmatpush1.bf16.msra.mxu0 %v396
    %509 = vmatprep.subr.bf16.mxu0 %v393
    %510 = vmatpush1.bf16.msra.mxu0 %v392
    %511 = vmatprep.subr.bf16.mxu0 0
    %512 = vmatpush2.bf16.msra.mxu0 0
    %513 = vmatprep.subr.bf16.mxu0 0
    %514 = vmatpush2.bf16.msra.mxu0 0
    %515 = vmatprep.subr.bf16.mxu0 0
    %516 = vmatpush2.bf16.msra.mxu0 0
    %517 = vmatprep.subr.bf16.mxu0 0
    %518 = vmatpush2.bf16.msra.mxu0 0
    %519 = vmatprep.subr.bf16.mxu0 0
    %520 = vmatpush2.bf16.msra.mxu0 0
    %521 = vmatprep.subr.bf16.mxu0 0
    %522 = vmatpush2.bf16.msra.mxu0 0
    %523 = vmatprep.subr.bf16.mxu0 0
    %524 = vmatpush2.bf16.msra.mxu0 0
    %525 = vmatprep.subr.bf16.mxu0 0
    %526 = vmatpush2.bf16.msra.mxu0 0
    %527 = vmatprep.mubr.bf16.mxu0 0
    %528 = vmatmul.mubr.bf16.gmra.mxu0 %v239
    %v529 = vpop.f32.mrf.mxu0
    %v530 = vadd.f32 %v285, %v529
    %v531 = vpop.f32.mrf.mxu0
    %v532 = vadd.f32 %v289, %v531
    %v533 = vpop.f32.mrf.mxu0
    %v534 = vpop.f32.mrf.mxu0
    %535 = vdwg.mxu0
    %v536 = vmul.f32 %v489, 0.5
    %v537 = vmul.f32 %v491, 0.5
    %v538 = vmul.f32 %v530, 0.5
    %v539 = vmul.f32 %v532, 0.5
    %v540 = vmul.f32 %v489, 0.70710677
    %v541 = vmul.f32 %v491, 0.70710677
    %v542 = vmul.f32 %v530, 0.70710677
    %v543 = vmul.f32 %v532, 0.70710677
    %v544 = verf.f32.pop %v540
    %v545 = verf.f32.pop %v541
    %v546 = verf.f32.pop %v542
    %v547 = verf.f32.pop %v543
    %v548 = vadd.f32 %v544, 1.0
    %v549 = vadd.f32 %v545, 1.0
    %v550 = vadd.f32 %v546, 1.0
    %v551 = vadd.f32 %v547, 1.0
    %v552 = vmul.f32 %v536, %v548
    %v553 = vmul.f32 %v537, %v549
    %v554 = vmul.f32 %v538, %v550
    %v555 = vmul.f32 %v539, %v551
    %v556 = vpack.c.bf16 %v552, %v552
    %v557 = vpack.c.bf16 %v553, %v553
    %v558 = vpack.c.bf16 %v554, %v554
    %v559 = vpack.c.bf16 %v555, %v555
    %v560 = vld [vmem:[#allocation8] sm:$0xf]
    %v561 = vld [vmem:[#allocation8 + $0x4] sm:$0xf]
    %v562 = vld [vmem:[#allocation8 + $0x8] sm:$0xf]
    %v563 = vld [vmem:[#allocation8 + $0xc] sm:$0xf]
    %v564 = vld [vmem:[#allocation8 + $0x10] sm:$0xf]
    %v565 = vld [vmem:[#allocation8 + $0x14] sm:$0xf]
    %v566 = vld [vmem:[#allocation8 + $0x18] sm:$0xf]
    %v567 = vld [vmem:[#allocation8 + $0x1c] sm:$0xf]
    %v568 = vld [vmem:[#allocation8 + $0x20] sm:$0xf]
    %v569 = vld [vmem:[#allocation8 + $0x24] sm:$0xf]
    %v570 = vld [vmem:[#allocation8 + $0x28] sm:$0xf]
    %v571 = vld [vmem:[#allocation8 + $0x2c] sm:$0xf]
    %v572 = vld [vmem:[#allocation8 + $0x30] sm:$0xf]
    %v573 = vld [vmem:[#allocation8 + $0x34] sm:$0xf]
    %v574 = vld [vmem:[#allocation8 + $0x38] sm:$0xf]
    %v575 = vld [vmem:[#allocation8 + $0x3c] sm:$0xf]
    %v576 = vld [vmem:[#allocation8 + $0x40] sm:$0xf]
    %v577 = vld [vmem:[#allocation8 + $0x44] sm:$0xf]
    %v578 = vld [vmem:[#allocation8 + $0x48] sm:$0xf]
    %v579 = vld [vmem:[#allocation8 + $0x4c] sm:$0xf]
    %v580 = vld [vmem:[#allocation8 + $0x50] sm:$0xf]
    %v581 = vld [vmem:[#allocation8 + $0x54] sm:$0xf]
    %v582 = vld [vmem:[#allocation8 + $0x58] sm:$0xf]
    %v583 = vld [vmem:[#allocation8 + $0x5c] sm:$0xf]
    %v584 = vld [vmem:[#allocation8 + $0x60] sm:$0xf]
    %v585 = vld [vmem:[#allocation8 + $0x64] sm:$0xf]
    %v586 = vld [vmem:[#allocation8 + $0x68] sm:$0xf]
    %v587 = vld [vmem:[#allocation8 + $0x6c] sm:$0xf]
    %v588 = vld [vmem:[#allocation8 + $0x70] sm:$0xf]
    %v589 = vld [vmem:[#allocation8 + $0x74] sm:$0xf]
    %v590 = vld [vmem:[#allocation8 + $0x78] sm:$0xf]
    %v591 = vld [vmem:[#allocation8 + $0x7c] sm:$0xf]
    %v592 = vld [vmem:[#allocation8 + $0x80] sm:$0xf]
    %v593 = vld [vmem:[#allocation8 + $0x84] sm:$0xf]
    %v594 = vld [vmem:[#allocation8 + $0x88] sm:$0xf]
    %v595 = vld [vmem:[#allocation8 + $0x8c] sm:$0xf]
    %v596 = vld [vmem:[#allocation8 + $0x90] sm:$0xf]
    %v597 = vld [vmem:[#allocation8 + $0x94] sm:$0xf]
    %v598 = vld [vmem:[#allocation8 + $0x98] sm:$0xf]
    %v599 = vld [vmem:[#allocation8 + $0x9c] sm:$0xf]
    %v600 = vld [vmem:[#allocation8 + $0xa0] sm:$0xf]
    %v601 = vld [vmem:[#allocation8 + $0xa4] sm:$0xf]
    %v602 = vld [vmem:[#allocation8 + $0xa8] sm:$0xf]
    %v603 = vld [vmem:[#allocation8 + $0xac] sm:$0xf]
    %v604 = vld [vmem:[#allocation8 + $0xb0] sm:$0xf]
    %v605 = vld [vmem:[#allocation8 + $0xb4] sm:$0xf]
    %v606 = vld [vmem:[#allocation8 + $0xb8] sm:$0xf]
    %v607 = vld [vmem:[#allocation8 + $0xbc] sm:$0xf]
    %v608 = vld [vmem:[#allocation8 + $0xc0] sm:$0xf]
    %v609 = vld [vmem:[#allocation8 + $0xc4] sm:$0xf]
    %v610 = vld [vmem:[#allocation8 + $0xc8] sm:$0xf]
    %v611 = vld [vmem:[#allocation8 + $0xcc] sm:$0xf]
    %v612 = vld [vmem:[#allocation8 + $0xd0] sm:$0xf]
    %v613 = vld [vmem:[#allocation8 + $0xd4] sm:$0xf]
    %v614 = vld [vmem:[#allocation8 + $0xd8] sm:$0xf]
    %v615 = vld [vmem:[#allocation8 + $0xdc] sm:$0xf]
    %v616 = vld [vmem:[#allocation8 + $0xe0] sm:$0xf]
    %v617 = vld [vmem:[#allocation8 + $0xe4] sm:$0xf]
    %v618 = vld [vmem:[#allocation8 + $0xe8] sm:$0xf]
    %v619 = vld [vmem:[#allocation8 + $0xec] sm:$0xf]
    %v620 = vld [vmem:[#allocation8 + $0xf0] sm:$0xf]
    %v621 = vld [vmem:[#allocation8 + $0xf4] sm:$0xf]
    %v622 = vld [vmem:[#allocation8 + $0xf8] sm:$0xf]
    %v623 = vld [vmem:[#allocation8 + $0xfc] sm:$0xf]
    %v624 = vld [vmem:[%s5] sm:$0x1]
    %v626 = vlaneseq
    %v627 = vshrl.u32 %v626, 7
    %v628 = vsub.s32 0, %v627
    %v629 = vrot.slane %v624, %v628
    %v695 = vunpack.c.l.b16 %v560
    %v696 = vunpack.c.l.b16 %v561
    %v697 = vunpack.c.l.b16 %v562
    %v698 = vunpack.c.l.b16 %v563
    %v699 = vunpack.c.l.b16 %v564
    %v700 = vunpack.c.l.b16 %v565
    %v701 = vunpack.c.l.b16 %v566
    %v702 = vunpack.c.l.b16 %v567
    %v703 = vunpack.c.l.b16 %v568
    %v704 = vunpack.c.l.b16 %v569
    %v705 = vunpack.c.l.b16 %v570
    %v706 = vunpack.c.l.b16 %v571
    %v707 = vunpack.c.l.b16 %v572
    %v708 = vunpack.c.l.b16 %v573
    %v709 = vunpack.c.l.b16 %v574
    %v710 = vunpack.c.l.b16 %v575
    %v711 = vunpack.c.l.b16 %v576
    %v712 = vunpack.c.l.b16 %v577
    %v713 = vunpack.c.l.b16 %v578
    %v714 = vunpack.c.l.b16 %v579
    %v715 = vunpack.c.l.b16 %v580
    %v716 = vunpack.c.l.b16 %v581
    %v717 = vunpack.c.l.b16 %v582
    %v718 = vunpack.c.l.b16 %v583
    %v719 = vunpack.c.l.b16 %v584
    %v720 = vunpack.c.l.b16 %v585
    %v721 = vunpack.c.l.b16 %v586
    %v722 = vunpack.c.l.b16 %v587
    %v723 = vunpack.c.l.b16 %v588
    %v724 = vunpack.c.l.b16 %v589
    %v725 = vunpack.c.l.b16 %v590
    %v726 = vunpack.c.l.b16 %v591
    %v727 = vunpack.c.l.b16 %v592
    %v728 = vunpack.c.l.b16 %v593
    %v729 = vunpack.c.l.b16 %v594
    %v730 = vunpack.c.l.b16 %v595
    %v731 = vunpack.c.l.b16 %v596
    %v732 = vunpack.c.l.b16 %v597
    %v733 = vunpack.c.l.b16 %v598
    %v734 = vunpack.c.l.b16 %v599
    %v735 = vunpack.c.l.b16 %v600
    %v736 = vunpack.c.l.b16 %v601
    %v737 = vunpack.c.l.b16 %v602
    %v738 = vunpack.c.l.b16 %v603
    %v739 = vunpack.c.l.b16 %v604
    %v740 = vunpack.c.l.b16 %v605
    %v741 = vunpack.c.l.b16 %v606
    %v742 = vunpack.c.l.b16 %v607
    %v743 = vunpack.c.l.b16 %v608
    %v744 = vunpack.c.l.b16 %v609
    %v745 = vunpack.c.l.b16 %v610
    %v746 = vunpack.c.l.b16 %v611
    %v747 = vunpack.c.l.b16 %v612
    %v748 = vunpack.c.l.b16 %v613
    %v749 = vunpack.c.l.b16 %v614
    %v750 = vunpack.c.l.b16 %v615
    %v751 = vunpack.c.l.b16 %v616
    %v752 = vunpack.c.l.b16 %v617
    %v753 = vunpack.c.l.b16 %v618
    %v754 = vunpack.c.l.b16 %v619
    %v755 = vunpack.c.l.b16 %v620
    %v756 = vunpack.c.l.b16 %v621
    %v757 = vunpack.c.l.b16 %v622
    %v758 = vunpack.c.l.b16 %v623
    %v759 = vpack.c.b16 %v696, %v695
    %v760 = vpack.c.b16 %v698, %v697
    %v761 = vpack.c.b16 %v700, %v699
    %v762 = vpack.c.b16 %v702, %v701
    %v763 = vpack.c.b16 %v704, %v703
    %v764 = vpack.c.b16 %v706, %v705
    %v765 = vpack.c.b16 %v708, %v707
    %v766 = vpack.c.b16 %v710, %v709
    %v767 = vpack.c.b16 %v712, %v711
    %v768 = vpack.c.b16 %v714, %v713
    %v769 = vpack.c.b16 %v716, %v715
    %v770 = vpack.c.b16 %v718, %v717
    %v771 = vpack.c.b16 %v720, %v719
    %v772 = vpack.c.b16 %v722, %v721
    %v773 = vpack.c.b16 %v724, %v723
    %v774 = vpack.c.b16 %v726, %v725
    %v775 = vpack.c.b16 %v728, %v727
    %v776 = vpack.c.b16 %v730, %v729
    %v777 = vpack.c.b16 %v732, %v731
    %v778 = vpack.c.b16 %v734, %v733
    %v779 = vpack.c.b16 %v736, %v735
    %v780 = vpack.c.b16 %v738, %v737
    %v781 = vpack.c.b16 %v740, %v739
    %v782 = vpack.c.b16 %v742, %v741
    %v783 = vpack.c.b16 %v744, %v743
    %v784 = vpack.c.b16 %v746, %v745
    %v785 = vpack.c.b16 %v748, %v747
    %v786 = vpack.c.b16 %v750, %v749
    %v787 = vpack.c.b16 %v752, %v751
    %v788 = vpack.c.b16 %v754, %v753
    %v789 = vpack.c.b16 %v756, %v755
    %v790 = vpack.c.b16 %v758, %v757
    %823 = vmatprep.subr.bf16.mxu0 0
    %824 = vmatpush1.bf16.msra.mxu0 %v766
    %825 = vmatprep.subr.bf16.mxu0 0
    %826 = vmatpush1.bf16.msra.mxu0 %v765
    %827 = vmatprep.subr.bf16.mxu0 0
    %828 = vmatpush1.bf16.msra.mxu0 %v764
    %829 = vmatprep.subr.bf16.mxu0 0
    %830 = vmatpush1.bf16.msra.mxu0 %v763
    %831 = vmatprep.subr.bf16.mxu0 0
    %832 = vmatpush1.bf16.msra.mxu0 %v762
    %833 = vmatprep.subr.bf16.mxu0 0
    %834 = vmatpush1.bf16.msra.mxu0 %v761
    %835 = vmatprep.subr.bf16.mxu0 0
    %836 = vmatpush1.bf16.msra.mxu0 %v760
    %837 = vmatprep.subr.bf16.mxu0 0
    %838 = vmatpush1.bf16.msra.mxu0 %v759
    %839 = vmatprep.subr.bf16.mxu0 0
    %840 = vmatpush2.bf16.msra.mxu0 %v774
    %841 = vmatprep.subr.bf16.mxu0 0
    %842 = vmatpush2.bf16.msra.mxu0 %v773
    %843 = vmatprep.subr.bf16.mxu0 0
    %844 = vmatpush2.bf16.msra.mxu0 %v772
    %845 = vmatprep.subr.bf16.mxu0 0
    %846 = vmatpush2.bf16.msra.mxu0 %v771
    %847 = vmatprep.subr.bf16.mxu0 0
    %848 = vmatpush2.bf16.msra.mxu0 %v770
    %849 = vmatprep.subr.bf16.mxu0 0
    %850 = vmatpush2.bf16.msra.mxu0 %v769
    %851 = vmatprep.subr.bf16.mxu0 0
    %852 = vmatpush2.bf16.msra.mxu0 %v768
    %853 = vmatprep.subr.bf16.mxu0 0
    %854 = vmatpush2.bf16.msra.mxu0 %v767
    %855 = vmatprep.mubr.bf16.mxu0 %v557
    %856 = vmatmul.mubr.bf16.gmra.mxu0 %v556
    %v857 = vpop.f32.mrf.mxu0
    %v858 = vadd.f32 %v629, %v857
    %v859 = vpop.f32.mrf.mxu0
    %v860 = vpop.f32.mrf.mxu0
    %v861 = vpop.f32.mrf.mxu0
    %862 = vdwg.mxu0
    %863 = vmatprep.subr.bf16.mxu0 0
    %864 = vmatpush1.bf16.msra.mxu0 %v782
    %865 = vmatprep.subr.bf16.mxu0 0
    %866 = vmatpush1.bf16.msra.mxu0 %v781
    %867 = vmatprep.subr.bf16.mxu0 0
    %868 = vmatpush1.bf16.msra.mxu0 %v780
    %869 = vmatprep.subr.bf16.mxu0 0
    %870 = vmatpush1.bf16.msra.mxu0 %v779
    %871 = vmatprep.subr.bf16.mxu0 0
    %872 = vmatpush1.bf16.msra.mxu0 %v778
    %873 = vmatprep.subr.bf16.mxu0 0
    %874 = vmatpush1.bf16.msra.mxu0 %v777
    %875 = vmatprep.subr.bf16.mxu0 0
    %876 = vmatpush1.bf16.msra.mxu0 %v776
    %877 = vmatprep.subr.bf16.mxu0 0
    %878 = vmatpush1.bf16.msra.mxu0 %v775
    %879 = vmatprep.subr.bf16.mxu0 0
    %880 = vmatpush2.bf16.msra.mxu0 %v790
    %881 = vmatprep.subr.bf16.mxu0 0
    %882 = vmatpush2.bf16.msra.mxu0 %v789
    %883 = vmatprep.subr.bf16.mxu0 0
    %884 = vmatpush2.bf16.msra.mxu0 %v788
    %885 = vmatprep.subr.bf16.mxu0 0
    %886 = vmatpush2.bf16.msra.mxu0 %v787
    %887 = vmatprep.subr.bf16.mxu0 0
    %888 = vmatpush2.bf16.msra.mxu0 %v786
    %889 = vmatprep.subr.bf16.mxu0 0
    %890 = vmatpush2.bf16.msra.mxu0 %v785
    %891 = vmatprep.subr.bf16.mxu0 0
    %892 = vmatpush2.bf16.msra.mxu0 %v784
    %893 = vmatprep.subr.bf16.mxu0 0
    %894 = vmatpush2.bf16.msra.mxu0 %v783
    %895 = vmatprep.mubr.bf16.mxu0 %v559
    %896 = vmatmul.mubr.bf16.gmra.mxu0 %v558
    %v897 = vpop.f32.mrf.mxu0
    %v898 = vadd.f32 %v858, %v897
    %v899 = vpop.f32.mrf.mxu0
    %v900 = vpop.f32.mrf.mxu0
    %v901 = vpop.f32.mrf.mxu0
    %902 = vdwg.mxu0
    %903 = vst [vmem:[#allocation10] sm:$0xff] %v898
    // Predicated region
    $region42: #{tpu_custom_call.1} parent=1 // pred_check
      _
    $region43: #{tpu_custom_call.1} parent=1 // pred_check_branch
      %905 = sbr.rel (0) target = $region45
    $region44: #{tpu_custom_call.1} parent=1 // pred_region
      %s907 = ssub.s32 128, 128
      %908 = vsyncadd [#allocation4], %s907
      %s910 = sshll.u32 [#allocation10], 4
      %s911 = int_to_ptr.vmem [resolvable:$true] %s910
      %913 = dma.vmem_to_hbm [thread:$0]  %s911, 128, %s6, [#allocation4]
    $region45: #{tpu_custom_call.1} parent=1 // pred_fallthru
      _
    // Predicated region
    $region46: #{tpu_custom_call.1} parent=1 // pred_check
      _
    $region47: #{tpu_custom_call.1} parent=1 // pred_check_branch
      %915 = sbr.rel (0) target = $region49
    $region48: #{tpu_custom_call.1} parent=1 // pred_region
      %916 = dma.done [#allocation4], 128
    $region49: #{tpu_custom_call.1} parent=1 // pred_fallthru
      _
    %917 = vsyncpa [#allocation3], 1
    %918 = vsyncpa [#allocation6], 1
    %919 = vsyncpa [#allocation9], 1
    %920 = vsyncpa [#allocation4], 1

</llo_original>
